<compile_context>
chip_gen: v7x
topology: tpu7x:2x2x1
jax: 0.10.0
libtpu: 0.0.40
codegen_flags: <defaults>
</compile_context>

<pallas_src>
import functools
import math

import jax
import jax.numpy as jnp
from jax import lax
from jax.experimental import pallas as pl
from jax.experimental.pallas import tpu as pltpu


def _round_up(x, m):
    return ((x + m - 1) // m) * m


def _pad_to(a, shape):
    pads = [(0, s - d) for d, s in zip(a.shape, shape)]
    if all(p == (0, 0) for p in pads):
        return a
    return jnp.pad(a, pads)


def _sublane_multiple(dtype):
    # Sublane packing of the dtype: f32 -> 8, bf16 -> 16, int8/fp8 -> 32.
    return max(8, 32 // jnp.dtype(dtype).itemsize)


def _pick_vmem_limit():
    cap = 64 * 1024 * 1024
    try:
        cap = int(getattr(pltpu.get_tpu_info(), "vmem_capacity_bytes", cap))
    except Exception:
        pass
    # Leave pipeline/DMA headroom: ~100 MiB on 128 MiB parts (v5e/v6e),
    # ~48 MiB on v7x (64 MiB physical per TC).
    return int(min(max(cap - 16 * 1024 * 1024, 32 * 1024 * 1024),
                   100 * 1024 * 1024))


def _sru_kernel(x_ref, w_ref, b_ref, c0_ref,          # inputs
                h_ref, cN_ref,                        # outputs
                c_carry, g_seq, f_seq,                # VMEM scratch
                *, L, TL, k, Dt, scale_x, activation_type, needs_mask, unroll):
    """Per (d_tile, time_chunk) body.

    x_ref : (TL, Bp, Din_p)        w_ref : (1, Din_p, k*Dt)   b_ref : (2, Dt)
    c0_ref: (Bp, Dt)               h_ref : (TL, Bp, Dt)       cN_ref: (Bp, Dt)
    c_carry: (Bp, Dt) f32          g_seq / f_seq: (TL, Bp, Dt) f32
    """
    t_chunk = pl.program_id(1)
    TLc, Bp, Din_p = x_ref.shape

    # --- carry init (first time chunk of every D tile) -----------------------
    @pl.when(t_chunk == 0)
    def _():
        c_carry[...] = c0_ref[...].astype(jnp.float32)

    # --- fused projection + scan-side gates (MXU + EUP, fully pipelined) -----
    x_chunk = x_ref[...]
    # Reshape in the input dtype (Bp is a multiple of its sublane packing),
    # then cast to the matmul dtype (bf16 by default).
    x2d = x_chunk.reshape(TLc * Bp, Din_p).astype(w_ref.dtype)
    w = w_ref[0]                                        # (Din_p, k*Dt)

    # Only x_tilde + forget are needed before the scan (width 2*Dt).
    u_scan = jnp.dot(x2d, w[:, :2 * Dt], preferred_element_type=jnp.float32)
    fb = b_ref[0:1, :].astype(jnp.float32)              # (1, Dt) forget bias
    x_tilde = u_scan[:, :Dt].reshape(TLc, Bp, Dt)
    forget = jax.nn.sigmoid(u_scan[:, Dt:2 * Dt] + fb).reshape(TLc, Bp, Dt)
    if needs_mask:
        # Fold the tail mask into the forget gate: f = 1  =>  c_t = c_{t-1}.
        t_ids = lax.broadcasted_iota(jnp.int32, (TLc, 1, 1), 0)
        forget = jnp.where(t_chunk * TL + t_ids < L, forget, 1.0)

    g_seq[...] = (1.0 - forget) * x_tilde               # g_t = (1-f_t)*x~_t
    f_seq[...] = forget

    # --- minimal serial c-scan: c_t = f_t * c_{t-1} + g_t (2 dependent ops) --
    def body(t, c_prev):
        c_new = f_seq[t] * c_prev + g_seq[t]
        g_seq[t] = c_new                                 # reuse g buffer for c
        return c_new

    c_last = lax.fori_loop(0, TLc, body, c_carry[...], unroll=unroll)
    c_carry[...] = c_last

    # --- deferred gates (off the serial chain): reset + highway --------------
    rb = b_ref[1:2, :].astype(jnp.float32)               # (1, Dt) reset bias
    if k == 3:
        u_rest = jnp.dot(x2d, w[:, 2 * Dt:3 * Dt],
                         preferred_element_type=jnp.float32)
        reset = jax.nn.sigmoid(u_rest + rb).reshape(TLc, Bp, Dt)
        x_prime = x_chunk.astype(jnp.float32)            # k==3: Din == D == Dt
        if scale_x != 1.0:
            x_prime = x_prime * scale_x
    else:
        u_rest = jnp.dot(x2d, w[:, 2 * Dt:4 * Dt],
                         preferred_element_type=jnp.float32)
        reset = jax.nn.sigmoid(u_rest[:, :Dt] + rb).reshape(TLc, Bp, Dt)
        x_prime = u_rest[:, Dt:2 * Dt].reshape(TLc, Bp, Dt)

    # --- vectorized activation + highway epilogue ----------------------------
    c_all = g_seq[...]
    if activation_type == 0:
        g_c = c_all
    elif activation_type == 1:
        g_c = jnp.tanh(c_all)
    elif activation_type == 2:
        g_c = jnp.maximum(c_all, 0.0)
    else:  # selu
        g_c = jax.nn.selu(c_all)

    h_ref[...] = ((g_c - x_prime) * reset + x_prime).astype(h_ref.dtype)

    @pl.when(t_chunk == pl.num_programs(1) - 1)
    def _():
        cN_ref[...] = c_last.astype(cN_ref.dtype)


def sru_cell_forward(input_, weight, bias, c0, *, hidden_size, k,
                     scale_x, activation_type, time_chunk=None,
                     d_tile=None, matmul_dtype=jnp.bfloat16):
    """Pallas implementation of SRUCell.forward (unidirectional, eval mode)."""
    L, B, Din = input_.shape
    D = hidden_size
    if k == 3:
        assert Din == D, "k == 3 requires input_size == hidden_size"
    dtype = input_.dtype

    # Lane/sublane-dense padded shapes (dtype-aware sublane padding).
    Bp = _round_up(B, _sublane_multiple(dtype))
    Dp = _round_up(D, 128)
    Din_p = _round_up(Din, 128)

    # D tiling (parallel grid axis; v7x second TensorCore + VMEM relief).
    if k == 3:
        Dt = Dp                         # highway path uses x itself -> 1 tile
    else:
        Dt = Dp if d_tile is None else _round_up(min(int(d_tile), Dp), 128)
        if Dp % Dt != 0:
            Dt = Dp
    n_dt = Dp // Dt

    # Time chunking: target M = TL*Bp >= 512 so the MXU rows are filled.
    if time_chunk is None:
        time_chunk = max(8, -(-512 // Bp))
    TL = max(1, min(L, int(time_chunk)))
    L_pad = _round_up(L, TL)
    n_chunks = L_pad // TL
    needs_mask = (L_pad != L)

    # Host-side weight layout: per-D-tile, gate-contiguous along lanes so the
    # kernel does one fat dot per phase and slices gates statically.
    w_kdm = weight.reshape(Din, D, k).transpose(2, 0, 1)       # (k, Din, D)
    w_kdm = _pad_to(w_kdm, (k, Din_p, Dp))
    w_f = (w_kdm.reshape(k, Din_p, n_dt, Dt)
                .transpose(2, 1, 0, 3)
                .reshape(n_dt, Din_p, k * Dt)
                .astype(matmul_dtype))
    b2 = _pad_to(bias.reshape(2, D), (2, Dp)).astype(jnp.float32)
    x_pad = _pad_to(input_, (L_pad, Bp, Din_p))
    c0_pad = _pad_to(c0, (Bp, Dp))

    kernel = functools.partial(
        _sru_kernel, L=L, TL=TL, k=k, Dt=Dt, scale_x=float(scale_x),
        activation_type=activation_type, needs_mask=needs_mask,
        unroll=max(1, min(TL, 8)))

    in_bytes = (x_pad.size * x_pad.dtype.itemsize * n_dt
                + w_f.size * w_f.dtype.itemsize
                + b2.size * b2.dtype.itemsize
                + c0_pad.size * c0_pad.dtype.itemsize)
    out_bytes = (L_pad * Bp * Dp + Bp * Dp) * jnp.dtype(dtype).itemsize
    cost = pl.CostEstimate(
        flops=2 * L * B * Din * k * D,
        transcendentals=3 * L * B * D,
        bytes_accessed=int(in_bytes + out_bytes))

    grid_spec = pltpu.PrefetchScalarGridSpec(
        num_scalar_prefetch=0,
        grid=(n_dt, n_chunks),
        in_specs=[
            # x chunk: re-fetched per D tile, double-buffered along time.
            pl.BlockSpec((TL, Bp, Din_p), lambda di, t: (t, 0, 0)),
            # Resident-per-D-tile blocks: single buffer (no useless 2x VMEM).
            pl.BlockSpec((1, Din_p, k * Dt), lambda di, t: (di, 0, 0),
                         pipeline_mode=pl.Buffered(1)),
            pl.BlockSpec((2, Dt), lambda di, t: (0, di),
                         pipeline_mode=pl.Buffered(1)),
            pl.BlockSpec((Bp, Dt), lambda di, t: (0, di),
                         pipeline_mode=pl.Buffered(1)),
        ],
        out_specs=(
            pl.BlockSpec((TL, Bp, Dt), lambda di, t: (t, 0, di)),   # h chunk
            pl.BlockSpec((Bp, Dt), lambda di, t: (0, di)),          # c_final
        ),
        scratch_shapes=[
            pltpu.VMEM((Bp, Dt), jnp.float32),       # c carry across chunks
            pltpu.VMEM((TL, Bp, Dt), jnp.float32),   # g_t, overwritten by c_t
            pltpu.VMEM((TL, Bp, Dt), jnp.float32),   # forget gate
        ],
    )

    h_pad, c_pad = pl.pallas_call(
        kernel,
        out_shape=(jax.ShapeDtypeStruct((L_pad, Bp, Dp), dtype),
                   jax.ShapeDtypeStruct((Bp, Dp), dtype)),
        grid_spec=grid_spec,
        compiler_params=pltpu.CompilerParams(
            dimension_semantics=("parallel", "arbitrary"),
            vmem_limit_bytes=_pick_vmem_limit()),
        cost_estimate=cost,
    )(x_pad, w_f, b2, c0_pad)

    return h_pad[:L, :B, :D], c_pad[:B, :D]


def sru_cell_reference(input_, weight, bias, c0, *, hidden_size, k,
                       scale_x, activation_type):
    """Pure-JAX re-implementation of _sru_compute_cpu for validation."""
    L, B, Din = input_.shape
    D = hidden_size
    u = (input_.reshape(L * B, Din) @ weight).reshape(L, B, D, k)
    x_tilde = u[..., 0]
    forget = jax.nn.sigmoid(u[..., 1] + bias[:D])
    reset = jax.nn.sigmoid(u[..., 2] + bias[D:2 * D])
    x_prime = input_ * scale_x if k == 3 else u[..., 3]

    def act(c):
        if activation_type == 0:
            return c
        if activation_type == 1:
            return jnp.tanh(c)
        if activation_type == 2:
            return jnp.maximum(c, 0.0)
        return jax.nn.selu(c)

    def step(c_prev, xs):
        xt, f, r, xp = xs
        c_t = (c_prev - xt) * f + xt
        h_t = (act(c_t) - xp) * r + xp
        return c_t, h_t

    c_last, h = lax.scan(step, c0, (x_tilde, forget, reset, x_prime))
    return h, c_last


def init_sru_params(key, input_size, hidden_size, highway_bias=0.0,
                    bidirectional=False, rescale=True):
    """Deterministic re-implementation of SRUCell.__init__ / init_weight."""
    assert not bidirectional, "demo covers the unidirectional cell"
    out_size = hidden_size
    k = 4 if input_size != out_size else 3
    size_per_dir = hidden_size * k

    val_range = (3.0 / input_size) ** 0.5
    weight = jax.random.uniform(key, (input_size, size_per_dir),
                                minval=-val_range, maxval=val_range,
                                dtype=jnp.float32)
    bias = jnp.zeros((hidden_size * 2,), jnp.float32)
    bias = bias.at[hidden_size:].set(highway_bias)

    scale_x = 1.0
    if rescale:
        scale_x = (1.0 + math.exp(highway_bias) * 2.0) ** 0.5
        if k == 4:  # rescale the highway branch of the weight (k==4 only)
            w = weight.reshape(input_size, 1, hidden_size, k)
            w = w.at[:, :, :, 3].multiply(scale_x)
            weight = w.reshape(input_size, size_per_dir)
        # stacked_dropout == recurrent_dropout == 0 -> no further rescaling
    return weight, bias, k, scale_x


if __name__ == "__main__":
    key = jax.random.PRNGKey(0)
    activation_type = 1  # tanh

    configs = [
        # SRUCell(32, 32, 'tanh'): k==3 highway path, single chunk, f32 MXU.
        dict(seq_len=8, batch=2, input_size=32, hidden_size=32,
             time_chunk=None, d_tile=None, mm_dtype=jnp.float32, tol=1e-4),
        # SRUCell(48, 32, 'tanh'): k==4 path, multi-chunk grid + tail mask.
        dict(seq_len=7, batch=2, input_size=48, hidden_size=32,
             time_chunk=4, d_tile=None, mm_dtype=jnp.float32, tol=1e-4),
        # SRUCell(48, 160, 'tanh'): k==4, two D tiles on the parallel axis.
        dict(seq_len=9, batch=2, input_size=48, hidden_size=160,
             time_chunk=4, d_tile=128, mm_dtype=jnp.float32, tol=1e-4),
        # Default fast path: bf16 MXU operands (looser check vs f32 reference).
        dict(seq_len=7, batch=2, input_size=48, hidden_size=32,
             time_chunk=4, d_tile=None, mm_dtype=jnp.bfloat16, tol=5e-2),
    ]

    for i, cfg in enumerate(configs):
        k_w, k_x, k_c, key = jax.random.split(key, 4)
        weight, bias, k, scale_x = init_sru_params(
            k_w, cfg["input_size"], cfg["hidden_size"], highway_bias=0.0)

        input_ = jax.random.normal(
            k_x, (cfg["seq_len"], cfg["batch"], cfg["input_size"]), jnp.float32)
        c0 = jax.random.normal(k_c, (cfg["batch"], cfg["hidden_size"]),
                               jnp.float32)

        h, c_last = sru_cell_forward(
            input_, weight, bias, c0,
            hidden_size=cfg["hidden_size"], k=k, scale_x=scale_x,
            activation_type=activation_type, time_chunk=cfg["time_chunk"],
            d_tile=cfg["d_tile"], matmul_dtype=cfg["mm_dtype"])
        h = jax.block_until_ready(h)
        c_last = jax.block_until_ready(c_last)

        h_ref, c_ref = sru_cell_reference(
            input_, weight, bias, c0,
            hidden_size=cfg["hidden_size"], k=k, scale_x=scale_x,
            activation_type=activation_type)

        assert h.shape == (cfg["seq_len"], cfg["batch"], cfg["hidden_size"])
        assert c_last.shape == (cfg["batch"], cfg["hidden_size"])
        tol = cfg["tol"]
        assert jnp.allclose(h, h_ref, atol=tol, rtol=tol), f"h mismatch (cfg {i})"
        assert jnp.allclose(c_last, c_ref, atol=tol, rtol=tol), f"c mismatch (cfg {i})"

    print("KERNEL_OK")
</pallas_src>

<mosaic_0001>
module attributes {stable_mosaic.version = 11 : i64} {
  func.func @_sru_kernel(%arg0: i32, %arg1: i32, %arg2: memref<8x8x128xf32, #tpu.memory_space<vmem>>, %arg3: memref<1x128x384xf32, #tpu.memory_space<vmem>>, %arg4: memref<2x128xf32, #tpu.memory_space<vmem>>, %arg5: memref<8x128xf32, #tpu.memory_space<vmem>>, %arg6: memref<8x8x128xf32, #tpu.memory_space<vmem>>, %arg7: memref<8x128xf32, #tpu.memory_space<vmem>>, %arg8: memref<8x128xf32, #tpu.memory_space<vmem>>, %arg9: memref<8x8x128xf32, #tpu.memory_space<vmem>>, %arg10: memref<8x8x128xf32, #tpu.memory_space<vmem>>) attributes {dimension_semantics = [#tpu.dimension_semantics<parallel>, #tpu.dimension_semantics<arbitrary>], iteration_bounds = array<i64: 1, 1>, scalar_prefetch = 0 : i64, scratch_operands = 3 : i64, tpu.core_type = #tpu.core_type<tc>, window_params = [{transform_indices = @transform_0, window_bounds = array<i64: 8, 8, 128>}, {pipeline_mode = #tpu.pipeline_mode<synchronous>, transform_indices = @transform_1, window_bounds = array<i64: 1, 128, 384>}, {pipeline_mode = #tpu.pipeline_mode<synchronous>, transform_indices = @transform_2, window_bounds = array<i64: 2, 128>}, {pipeline_mode = #tpu.pipeline_mode<synchronous>, transform_indices = @transform_3, window_bounds = array<i64: 8, 128>}, {transform_indices = @transform_4, window_bounds = array<i64: 8, 8, 128>}, {transform_indices = @transform_5, window_bounds = array<i64: 8, 128>}]} {
    %c0_i32 = arith.constant 0 : i32
    %0 = arith.cmpi eq, %arg1, %c0_i32 : i32
    %1 = arith.extui %0 : i1 to i32
    %c0_i32_0 = arith.constant 0 : i32
    %2 = arith.cmpi ne, %1, %c0_i32_0 : i32
    scf.if %2 {
      %c0_81 = arith.constant 0 : index
      %c0_82 = arith.constant 0 : index
      %146 = vector.load %arg5[%c0_81, %c0_82] : memref<8x128xf32, #tpu.memory_space<vmem>>, vector<8x128xf32>
      %c0_83 = arith.constant 0 : index
      %c0_84 = arith.constant 0 : index
      %147 = vector.load %arg8[%c0_83, %c0_84] : memref<8x128xf32, #tpu.memory_space<vmem>>, vector<8x128xf32>
      tpu.vector_store %arg8[%c0_83, %c0_84], %146 {strides = array<i32>} : memref<8x128xf32, #tpu.memory_space<vmem>>, vector<8x128xf32>,
    } else {
    }
    %c0 = arith.constant 0 : index
    %c0_1 = arith.constant 0 : index
    %c0_2 = arith.constant 0 : index
    %3 = vector.load %arg2[%c0, %c0_1, %c0_2] : memref<8x8x128xf32, #tpu.memory_space<vmem>>, vector<8x8x128xf32>
    %4 = vector.shape_cast %3 : vector<8x8x128xf32> to vector<64x128xf32>
    %c0_3 = arith.constant 0 : index
    %c0_4 = arith.constant 0 : index
    %c0_5 = arith.constant 0 : index
    %5 = vector.load %arg3[%c0_3, %c0_4, %c0_5] : memref<1x128x384xf32, #tpu.memory_space<vmem>>, vector<1x128x384xf32>
    %6 = vector.shape_cast %5 : vector<1x128x384xf32> to vector<128x384xf32>
    %7 = vector.extract_strided_slice %6 {offsets = [0, 0], sizes = [128, 256], strides = [1, 1]} : vector<128x384xf32> to vector<128x256xf32>
    %cst = arith.constant dense<0.000000e+00> : vector<64x256xf32>
    %8 = tpu.matmul %4, %7, %cst {dimension_numbers = #tpu.dot_dimension_numbers<[1], [0], [0], [1], [0, 0, 1, 1], [], []>} : vector<64x128xf32>, vector<128x256xf32>, vector<64x256xf32> -> vector<64x256xf32>
    %c0_6 = arith.constant 0 : index
    %c0_7 = arith.constant 0 : index
    %9 = vector.load %arg4[%c0_6, %c0_7] : memref<2x128xf32, #tpu.memory_space<vmem>>, vector<1x128xf32>
    %10 = vector.extract_strided_slice %8 {offsets = [0, 0], sizes = [64, 128], strides = [1, 1]} : vector<64x256xf32> to vector<64x128xf32>
    %11 = vector.shape_cast %10 : vector<64x128xf32> to vector<8x8x128xf32>
    %12 = vector.extract_strided_slice %8 {offsets = [0, 128], sizes = [64, 128], strides = [1, 1]} : vector<64x256xf32> to vector<64x128xf32>
    %13 = vector.broadcast %9 : vector<1x128xf32> to vector<64x128xf32>
    %14 = arith.addf %12, %13 : vector<64x128xf32>
    %15 = arith.negf %14 : vector<64x128xf32>
    %16 = math.exp %15 : vector<64x128xf32>
    %cst_8 = arith.constant 1.000000e+00 : f32
    %17 = vector.broadcast %cst_8 : f32 to vector<64x128xf32>
    %18 = arith.addf %17, %16 : vector<64x128xf32>
    %19 = arith.divf %17, %18 : vector<64x128xf32>
    %20 = vector.shape_cast %19 : vector<64x128xf32> to vector<8x8x128xf32>
    %cst_9 = arith.constant 1.000000e+00 : f32
    %21 = vector.broadcast %cst_9 : f32 to vector<8x8x128xf32>
    %22 = arith.subf %21, %20 : vector<8x8x128xf32>
    %23 = arith.mulf %22, %11 : vector<8x8x128xf32>
    %c0_10 = arith.constant 0 : index
    %c0_11 = arith.constant 0 : index
    %c0_12 = arith.constant 0 : index
    %24 = vector.load %arg9[%c0_10, %c0_11, %c0_12] : memref<8x8x128xf32, #tpu.memory_space<vmem>>, vector<8x8x128xf32>
    tpu.vector_store %arg9[%c0_10, %c0_11, %c0_12], %23 {strides = array<i32>} : memref<8x8x128xf32, #tpu.memory_space<vmem>>, vector<8x8x128xf32>,
    %c0_13 = arith.constant 0 : index
    %c0_14 = arith.constant 0 : index
    %c0_15 = arith.constant 0 : index
    %25 = vector.load %arg10[%c0_13, %c0_14, %c0_15] : memref<8x8x128xf32, #tpu.memory_space<vmem>>, vector<8x8x128xf32>
    tpu.vector_store %arg10[%c0_13, %c0_14, %c0_15], %20 {strides = array<i32>} : memref<8x8x128xf32, #tpu.memory_space<vmem>>, vector<8x8x128xf32>,
    %c0_16 = arith.constant 0 : index
    %c0_17 = arith.constant 0 : index
    %26 = vector.load %arg8[%c0_16, %c0_17] : memref<8x128xf32, #tpu.memory_space<vmem>>, vector<8x128xf32>
    %c0_i32_18 = arith.constant 0 : i32
    %27 = arith.index_cast %c0_i32_18 : i32 to index
    %c0_19 = arith.constant 0 : index
    %c0_20 = arith.constant 0 : index
    %28 = vector.load %arg10[%27, %c0_19, %c0_20] : memref<8x8x128xf32, #tpu.memory_space<vmem>>, vector<1x8x128xf32>
    %29 = vector.shape_cast %28 : vector<1x8x128xf32> to vector<8x128xf32>
    %30 = arith.mulf %29, %26 : vector<8x128xf32>
    %31 = arith.index_cast %c0_i32_18 : i32 to index
    %c0_21 = arith.constant 0 : index
    %c0_22 = arith.constant 0 : index
    %32 = vector.load %arg9[%31, %c0_21, %c0_22] : memref<8x8x128xf32, #tpu.memory_space<vmem>>, vector<1x8x128xf32>
    %33 = vector.shape_cast %32 : vector<1x8x128xf32> to vector<8x128xf32>
    %34 = arith.addf %30, %33 : vector<8x128xf32>
    %35 = arith.index_cast %c0_i32_18 : i32 to index
    %c0_23 = arith.constant 0 : index
    %c0_24 = arith.constant 0 : index
    %36 = vector.load %arg9[%35, %c0_23, %c0_24] : memref<8x8x128xf32, #tpu.memory_space<vmem>>, vector<1x8x128xf32>
    %37 = vector.shape_cast %36 : vector<1x8x128xf32> to vector<8x128xf32>
    %38 = vector.shape_cast %34 : vector<8x128xf32> to vector<1x8x128xf32>
    tpu.vector_store %arg9[%35, %c0_23, %c0_24], %38 {strides = array<i32>} : memref<8x8x128xf32, #tpu.memory_space<vmem>>, vector<1x8x128xf32>,
    %c1_i32 = arith.constant 1 : i32
    %39 = arith.index_cast %c1_i32 : i32 to index
    %c0_25 = arith.constant 0 : index
    %c0_26 = arith.constant 0 : index
    %40 = vector.load %arg10[%39, %c0_25, %c0_26] : memref<8x8x128xf32, #tpu.memory_space<vmem>>, vector<1x8x128xf32>
    %41 = vector.shape_cast %40 : vector<1x8x128xf32> to vector<8x128xf32>
    %42 = arith.mulf %41, %34 : vector<8x128xf32>
    %43 = arith.index_cast %c1_i32 : i32 to index
    %c0_27 = arith.constant 0 : index
    %c0_28 = arith.constant 0 : index
    %44 = vector.load %arg9[%43, %c0_27, %c0_28] : memref<8x8x128xf32, #tpu.memory_space<vmem>>, vector<1x8x128xf32>
    %45 = vector.shape_cast %44 : vector<1x8x128xf32> to vector<8x128xf32>
    %46 = arith.addf %42, %45 : vector<8x128xf32>
    %47 = arith.index_cast %c1_i32 : i32 to index
    %c0_29 = arith.constant 0 : index
    %c0_30 = arith.constant 0 : index
    %48 = vector.load %arg9[%47, %c0_29, %c0_30] : memref<8x8x128xf32, #tpu.memory_space<vmem>>, vector<1x8x128xf32>
    %49 = vector.shape_cast %48 : vector<1x8x128xf32> to vector<8x128xf32>
    %50 = vector.shape_cast %46 : vector<8x128xf32> to vector<1x8x128xf32>
    tpu.vector_store %arg9[%47, %c0_29, %c0_30], %50 {strides = array<i32>} : memref<8x8x128xf32, #tpu.memory_space<vmem>>, vector<1x8x128xf32>,
    %c2_i32 = arith.constant 2 : i32
    %51 = arith.index_cast %c2_i32 : i32 to index
    %c0_31 = arith.constant 0 : index
    %c0_32 = arith.constant 0 : index
    %52 = vector.load %arg10[%51, %c0_31, %c0_32] : memref<8x8x128xf32, #tpu.memory_space<vmem>>, vector<1x8x128xf32>
    %53 = vector.shape_cast %52 : vector<1x8x128xf32> to vector<8x128xf32>
    %54 = arith.mulf %53, %46 : vector<8x128xf32>
    %55 = arith.index_cast %c2_i32 : i32 to index
    %c0_33 = arith.constant 0 : index
    %c0_34 = arith.constant 0 : index
    %56 = vector.load %arg9[%55, %c0_33, %c0_34] : memref<8x8x128xf32, #tpu.memory_space<vmem>>, vector<1x8x128xf32>
    %57 = vector.shape_cast %56 : vector<1x8x128xf32> to vector<8x128xf32>
    %58 = arith.addf %54, %57 : vector<8x128xf32>
    %59 = arith.index_cast %c2_i32 : i32 to index
    %c0_35 = arith.constant 0 : index
    %c0_36 = arith.constant 0 : index
    %60 = vector.load %arg9[%59, %c0_35, %c0_36] : memref<8x8x128xf32, #tpu.memory_space<vmem>>, vector<1x8x128xf32>
    %61 = vector.shape_cast %60 : vector<1x8x128xf32> to vector<8x128xf32>
    %62 = vector.shape_cast %58 : vector<8x128xf32> to vector<1x8x128xf32>
    tpu.vector_store %arg9[%59, %c0_35, %c0_36], %62 {strides = array<i32>} : memref<8x8x128xf32, #tpu.memory_space<vmem>>, vector<1x8x128xf32>,
    %c3_i32 = arith.constant 3 : i32
    %63 = arith.index_cast %c3_i32 : i32 to index
    %c0_37 = arith.constant 0 : index
    %c0_38 = arith.constant 0 : index
    %64 = vector.load %arg10[%63, %c0_37, %c0_38] : memref<8x8x128xf32, #tpu.memory_space<vmem>>, vector<1x8x128xf32>
    %65 = vector.shape_cast %64 : vector<1x8x128xf32> to vector<8x128xf32>
    %66 = arith.mulf %65, %58 : vector<8x128xf32>
    %67 = arith.index_cast %c3_i32 : i32 to index
    %c0_39 = arith.constant 0 : index
    %c0_40 = arith.constant 0 : index
    %68 = vector.load %arg9[%67, %c0_39, %c0_40] : memref<8x8x128xf32, #tpu.memory_space<vmem>>, vector<1x8x128xf32>
    %69 = vector.shape_cast %68 : vector<1x8x128xf32> to vector<8x128xf32>
    %70 = arith.addf %66, %69 : vector<8x128xf32>
    %71 = arith.index_cast %c3_i32 : i32 to index
    %c0_41 = arith.constant 0 : index
    %c0_42 = arith.constant 0 : index
    %72 = vector.load %arg9[%71, %c0_41, %c0_42] : memref<8x8x128xf32, #tpu.memory_space<vmem>>, vector<1x8x128xf32>
    %73 = vector.shape_cast %72 : vector<1x8x128xf32> to vector<8x128xf32>
    %74 = vector.shape_cast %70 : vector<8x128xf32> to vector<1x8x128xf32>
    tpu.vector_store %arg9[%71, %c0_41, %c0_42], %74 {strides = array<i32>} : memref<8x8x128xf32, #tpu.memory_space<vmem>>, vector<1x8x128xf32>,
    %c4_i32 = arith.constant 4 : i32
    %75 = arith.index_cast %c4_i32 : i32 to index
    %c0_43 = arith.constant 0 : index
    %c0_44 = arith.constant 0 : index
    %76 = vector.load %arg10[%75, %c0_43, %c0_44] : memref<8x8x128xf32, #tpu.memory_space<vmem>>, vector<1x8x128xf32>
    %77 = vector.shape_cast %76 : vector<1x8x128xf32> to vector<8x128xf32>
    %78 = arith.mulf %77, %70 : vector<8x128xf32>
    %79 = arith.index_cast %c4_i32 : i32 to index
    %c0_45 = arith.constant 0 : index
    %c0_46 = arith.constant 0 : index
    %80 = vector.load %arg9[%79, %c0_45, %c0_46] : memref<8x8x128xf32, #tpu.memory_space<vmem>>, vector<1x8x128xf32>
    %81 = vector.shape_cast %80 : vector<1x8x128xf32> to vector<8x128xf32>
    %82 = arith.addf %78, %81 : vector<8x128xf32>
    %83 = arith.index_cast %c4_i32 : i32 to index
    %c0_47 = arith.constant 0 : index
    %c0_48 = arith.constant 0 : index
    %84 = vector.load %arg9[%83, %c0_47, %c0_48] : memref<8x8x128xf32, #tpu.memory_space<vmem>>, vector<1x8x128xf32>
    %85 = vector.shape_cast %84 : vector<1x8x128xf32> to vector<8x128xf32>
    %86 = vector.shape_cast %82 : vector<8x128xf32> to vector<1x8x128xf32>
    tpu.vector_store %arg9[%83, %c0_47, %c0_48], %86 {strides = array<i32>} : memref<8x8x128xf32, #tpu.memory_space<vmem>>, vector<1x8x128xf32>,
    %c5_i32 = arith.constant 5 : i32
    %87 = arith.index_cast %c5_i32 : i32 to index
    %c0_49 = arith.constant 0 : index
    %c0_50 = arith.constant 0 : index
    %88 = vector.load %arg10[%87, %c0_49, %c0_50] : memref<8x8x128xf32, #tpu.memory_space<vmem>>, vector<1x8x128xf32>
    %89 = vector.shape_cast %88 : vector<1x8x128xf32> to vector<8x128xf32>
    %90 = arith.mulf %89, %82 : vector<8x128xf32>
    %91 = arith.index_cast %c5_i32 : i32 to index
    %c0_51 = arith.constant 0 : index
    %c0_52 = arith.constant 0 : index
    %92 = vector.load %arg9[%91, %c0_51, %c0_52] : memref<8x8x128xf32, #tpu.memory_space<vmem>>, vector<1x8x128xf32>
    %93 = vector.shape_cast %92 : vector<1x8x128xf32> to vector<8x128xf32>
    %94 = arith.addf %90, %93 : vector<8x128xf32>
    %95 = arith.index_cast %c5_i32 : i32 to index
    %c0_53 = arith.constant 0 : index
    %c0_54 = arith.constant 0 : index
    %96 = vector.load %arg9[%95, %c0_53, %c0_54] : memref<8x8x128xf32, #tpu.memory_space<vmem>>, vector<1x8x128xf32>
    %97 = vector.shape_cast %96 : vector<1x8x128xf32> to vector<8x128xf32>
    %98 = vector.shape_cast %94 : vector<8x128xf32> to vector<1x8x128xf32>
    tpu.vector_store %arg9[%95, %c0_53, %c0_54], %98 {strides = array<i32>} : memref<8x8x128xf32, #tpu.memory_space<vmem>>, vector<1x8x128xf32>,
    %c6_i32 = arith.constant 6 : i32
    %99 = arith.index_cast %c6_i32 : i32 to index
    %c0_55 = arith.constant 0 : index
    %c0_56 = arith.constant 0 : index
    %100 = vector.load %arg10[%99, %c0_55, %c0_56] : memref<8x8x128xf32, #tpu.memory_space<vmem>>, vector<1x8x128xf32>
    %101 = vector.shape_cast %100 : vector<1x8x128xf32> to vector<8x128xf32>
    %102 = arith.mulf %101, %94 : vector<8x128xf32>
    %103 = arith.index_cast %c6_i32 : i32 to index
    %c0_57 = arith.constant 0 : index
    %c0_58 = arith.constant 0 : index
    %104 = vector.load %arg9[%103, %c0_57, %c0_58] : memref<8x8x128xf32, #tpu.memory_space<vmem>>, vector<1x8x128xf32>
    %105 = vector.shape_cast %104 : vector<1x8x128xf32> to vector<8x128xf32>
    %106 = arith.addf %102, %105 : vector<8x128xf32>
    %107 = arith.index_cast %c6_i32 : i32 to index
    %c0_59 = arith.constant 0 : index
    %c0_60 = arith.constant 0 : index
    %108 = vector.load %arg9[%107, %c0_59, %c0_60] : memref<8x8x128xf32, #tpu.memory_space<vmem>>, vector<1x8x128xf32>
    %109 = vector.shape_cast %108 : vector<1x8x128xf32> to vector<8x128xf32>
    %110 = vector.shape_cast %106 : vector<8x128xf32> to vector<1x8x128xf32>
    tpu.vector_store %arg9[%107, %c0_59, %c0_60], %110 {strides = array<i32>} : memref<8x8x128xf32, #tpu.memory_space<vmem>>, vector<1x8x128xf32>,
    %c7_i32 = arith.constant 7 : i32
    %111 = arith.index_cast %c7_i32 : i32 to index
    %c0_61 = arith.constant 0 : index
    %c0_62 = arith.constant 0 : index
    %112 = vector.load %arg10[%111, %c0_61, %c0_62] : memref<8x8x128xf32, #tpu.memory_space<vmem>>, vector<1x8x128xf32>
    %113 = vector.shape_cast %112 : vector<1x8x128xf32> to vector<8x128xf32>
    %114 = arith.mulf %113, %106 : vector<8x128xf32>
    %115 = arith.index_cast %c7_i32 : i32 to index
    %c0_63 = arith.constant 0 : index
    %c0_64 = arith.constant 0 : index
    %116 = vector.load %arg9[%115, %c0_63, %c0_64] : memref<8x8x128xf32, #tpu.memory_space<vmem>>, vector<1x8x128xf32>
    %117 = vector.shape_cast %116 : vector<1x8x128xf32> to vector<8x128xf32>
    %118 = arith.addf %114, %117 : vector<8x128xf32>
    %119 = arith.index_cast %c7_i32 : i32 to index
    %c0_65 = arith.constant 0 : index
    %c0_66 = arith.constant 0 : index
    %120 = vector.load %arg9[%119, %c0_65, %c0_66] : memref<8x8x128xf32, #tpu.memory_space<vmem>>, vector<1x8x128xf32>
    %121 = vector.shape_cast %120 : vector<1x8x128xf32> to vector<8x128xf32>
    %122 = vector.shape_cast %118 : vector<8x128xf32> to vector<1x8x128xf32>
    tpu.vector_store %arg9[%119, %c0_65, %c0_66], %122 {strides = array<i32>} : memref<8x8x128xf32, #tpu.memory_space<vmem>>, vector<1x8x128xf32>,
    %c8_i32 = arith.constant 8 : i32
    %c0_67 = arith.constant 0 : index
    %c0_68 = arith.constant 0 : index
    %123 = vector.load %arg8[%c0_67, %c0_68] : memref<8x128xf32, #tpu.memory_space<vmem>>, vector<8x128xf32>
    tpu.vector_store %arg8[%c0_67, %c0_68], %118 {strides = array<i32>} : memref<8x128xf32, #tpu.memory_space<vmem>>, vector<8x128xf32>,
    %c1 = arith.constant 1 : index
    %c0_69 = arith.constant 0 : index
    %124 = vector.load %arg4[%c1, %c0_69] : memref<2x128xf32, #tpu.memory_space<vmem>>, vector<1x128xf32>
    %125 = vector.extract_strided_slice %6 {offsets = [0, 256], sizes = [128, 128], strides = [1, 1]} : vector<128x384xf32> to vector<128x128xf32>
    %cst_70 = arith.constant dense<0.000000e+00> : vector<64x128xf32>
    %126 = tpu.matmul %4, %125, %cst_70 {dimension_numbers = #tpu.dot_dimension_numbers<[1], [0], [0], [1], [0, 0, 1, 1], [], []>} : vector<64x128xf32>, vector<128x128xf32>, vector<64x128xf32> -> vector<64x128xf32>
    %127 = vector.broadcast %124 : vector<1x128xf32> to vector<64x128xf32>
    %128 = arith.addf %126, %127 : vector<64x128xf32>
    %129 = arith.negf %128 : vector<64x128xf32>
    %130 = math.exp %129 : vector<64x128xf32>
    %cst_71 = arith.constant 1.000000e+00 : f32
    %131 = vector.broadcast %cst_71 : f32 to vector<64x128xf32>
    %132 = arith.addf %131, %130 : vector<64x128xf32>
    %133 = arith.divf %131, %132 : vector<64x128xf32>
    %134 = vector.shape_cast %133 : vector<64x128xf32> to vector<8x8x128xf32>
    %cst_72 = arith.constant 1.73205078 : f32
    %135 = vector.broadcast %cst_72 : f32 to vector<8x8x128xf32>
    %136 = arith.mulf %3, %135 : vector<8x8x128xf32>
    %c0_73 = arith.constant 0 : index
    %c0_74 = arith.constant 0 : index
    %c0_75 = arith.constant 0 : index
    %137 = vector.load %arg9[%c0_73, %c0_74, %c0_75] : memref<8x8x128xf32, #tpu.memory_space<vmem>>, vector<8x8x128xf32>
    %138 = math.tanh %137 : vector<8x8x128xf32>
    %139 = arith.subf %138, %136 : vector<8x8x128xf32>
    %140 = arith.mulf %139, %134 : vector<8x8x128xf32>
    %141 = arith.addf %140, %136 : vector<8x8x128xf32>
    %c0_76 = arith.constant 0 : index
    %c0_77 = arith.constant 0 : index
    %c0_78 = arith.constant 0 : index
    %142 = vector.load %arg6[%c0_76, %c0_77, %c0_78] : memref<8x8x128xf32, #tpu.memory_space<vmem>>, vector<8x8x128xf32>
    tpu.vector_store %arg6[%c0_76, %c0_77, %c0_78], %141 {strides = array<i32>} : memref<8x8x128xf32, #tpu.memory_space<vmem>>, vector<8x8x128xf32>,
    %c0_i32_79 = arith.constant 0 : i32
    %143 = arith.cmpi eq, %arg1, %c0_i32_79 : i32
    %144 = arith.extui %143 : i1 to i32
    %c0_i32_80 = arith.constant 0 : i32
    %145 = arith.cmpi ne, %144, %c0_i32_80 : i32
    scf.if %145 {
      %c0_81 = arith.constant 0 : index
      %c0_82 = arith.constant 0 : index
      %146 = vector.load %arg7[%c0_81, %c0_82] : memref<8x128xf32, #tpu.memory_space<vmem>>, vector<8x128xf32>
      tpu.vector_store %arg7[%c0_81, %c0_82], %118 {strides = array<i32>} : memref<8x128xf32, #tpu.memory_space<vmem>>, vector<8x128xf32>,
    } else {
    }
    return
  }
  func.func @transform_0(%arg0: i32, %arg1: i32) -> (i32, i32, i32) {
    %c0_i32 = arith.constant 0 : i32
    %c0_i32_0 = arith.constant 0 : i32
    %c0_i32_1 = arith.constant 0 : i32
    return %arg1, %c0_i32, %c0_i32_0 : i32, i32, i32
  }
  func.func @transform_1(%arg0: i32, %arg1: i32) -> (i32, i32, i32) {
    %c0_i32 = arith.constant 0 : i32
    %c0_i32_0 = arith.constant 0 : i32
    %c0_i32_1 = arith.constant 0 : i32
    return %arg0, %c0_i32, %c0_i32_0 : i32, i32, i32
  }
  func.func @transform_2(%arg0: i32, %arg1: i32) -> (i32, i32) {
    %c0_i32 = arith.constant 0 : i32
    %c0_i32_0 = arith.constant 0 : i32
    return %c0_i32, %arg0 : i32, i32
  }
  func.func @transform_3(%arg0: i32, %arg1: i32) -> (i32, i32) {
    %c0_i32 = arith.constant 0 : i32
    %c0_i32_0 = arith.constant 0 : i32
    return %c0_i32, %arg0 : i32, i32
  }
  func.func @transform_4(%arg0: i32, %arg1: i32) -> (i32, i32, i32) {
    %c0_i32 = arith.constant 0 : i32
    %c0_i32_0 = arith.constant 0 : i32
    return %arg1, %c0_i32, %arg0 : i32, i32, i32
  }
  func.func @transform_5(%arg0: i32, %arg1: i32) -> (i32, i32) {
    %c0_i32 = arith.constant 0 : i32
    %c0_i32_0 = arith.constant 0 : i32
    return %c0_i32, %arg0 : i32, i32
  }
}

</mosaic_0001>

<llo_original>
// kernel: tpu_custom_call.1
$region0: #{tpu_custom_call.1}
  #allocation0 [shape = 'u32[]', space=smem, size = 0x4, offset = 0x4, fixed_abs, tag = 'smem constant byte address 0x4 - core index']
  #allocation1 [shape = 'u32[144,128]{1,0:T(1,128)}', space=vmem, size = 0x12000, scoped, tag = 'internal scratch']
  #allocation2 [shape = 'f32[8,128]{1,0:T(8,128)}', space=vmem, size = 0x1000, scoped, tag = 'scratch operand']
  #allocation3 [shape = 'f32[8,8,128]{2,1,0:T(8,128)}', space=vmem, size = 0x8000, scoped, tag = 'scratch operand']
  #allocation4 [shape = 'f32[8,8,128]{2,1,0:T(8,128)}', space=vmem, size = 0x8000, scoped, tag = 'scratch operand']
  %s0 = inlined_call_operand.hbm [shape: f32[8,8,128], index: 0, kind: input, shape index: {}]
  %s1 = inlined_call_operand.hbm [shape: f32[1,128,384], index: 1, kind: input, shape index: {}]
  %s2 = inlined_call_operand.vmem [shape: f32[2,128], index: 2, kind: input, shape index: {}]
  %s3 = inlined_call_operand.vmem [shape: f32[8,128], index: 3, kind: input, shape index: {}]
  %s4 = inlined_call_operand.hbm [shape: f32[8,8,128], index: 4, kind: output, shape index: {0}]
  %s5 = inlined_call_operand.hbm [shape: f32[8,128], index: 5, kind: output, shape index: {1}]
  %6 = xla_tuple %s4, %s5
  %s7 = sld [smem:[#allocation0]]
  $region50: #{tpu_custom_call.1} parent=0
    _
  %s9 = ssub.s32 1, %s7
  %s10 = scalar_select 0, %s9, %s7
  $region1: #{tpu_custom_call.1} parent=0
    #allocation5 [shape = 'u8[32768]{0}', space=vmem, size = 0x8000, scoped, tag = 'input window, operand 0, single buffered']
    #allocation6 [shape = 's32[1]{0}', space=sflag, size = 0x4, scoped, tag = 'scoped memory for tpu_custom_call.1']
    #allocation7 [shape = 's32[1]{0}', space=sflag, size = 0x4, scoped, tag = 'scoped memory for tpu_custom_call.1']
    #allocation8 [shape = 'u8[196608]{0}', space=vmem, size = 0x30000, scoped, tag = 'input window, operand 1, single buffered']
    #allocation9 [shape = 's32[1]{0}', space=sflag, size = 0x4, scoped, tag = 'scoped memory for tpu_custom_call.1']
    #allocation10 [shape = 'u8[32768]{0}', space=vmem, size = 0x8000, scoped, tag = 'output window, operand 0, single buffered']
    #allocation11 [shape = 'u8[4096]{0}', space=vmem, size = 0x1000, scoped, tag = 'output window, operand 1, single buffered']
    #allocation12 [shape = 's32[1]{0}', space=sflag, size = 0x4, scoped, tag = 'scoped memory for tpu_custom_call.1']
    %11 = vsyncpa [#allocation6], 0
    %12 = vsyncpa [#allocation9], 0
    %13 = vsyncpa [#allocation7], 0
    %14 = vsyncpa [#allocation12], 0
    // Predicated region
    $region2: #{tpu_custom_call.1} parent=1 // pred_check
      _
    $region3: #{tpu_custom_call.1} parent=1 // pred_check_branch
      %16 = sbr.rel (0) target = $region5
    $region4: #{tpu_custom_call.1} parent=1 // pred_region
      %s18 = ssub.s32 1024, 1024
      %19 = vsyncadd [#allocation6], %s18
      %s20 = sshll.u32 [#allocation5], 4
      %s21 = int_to_ptr.vmem [resolvable:$true] %s20
      %26 = dma.hbm_to_vmem [thread:$0]  %s0, 1024, %s21, [#allocation6], 128, 128, 8
    $region5: #{tpu_custom_call.1} parent=1 // pred_fallthru
      _
    // Predicated region
    $region6: #{tpu_custom_call.1} parent=1 // pred_check
      _
    $region7: #{tpu_custom_call.1} parent=1 // pred_check_branch
      %28 = sbr.rel (0) target = $region9
    $region8: #{tpu_custom_call.1} parent=1 // pred_region
      %s30 = ssub.s32 6144, 6144
      %31 = vsyncadd [#allocation9], %s30
      %s32 = sshll.u32 [#allocation8], 4
      %s33 = int_to_ptr.vmem [resolvable:$true] %s32
      %38 = dma.hbm_to_vmem [thread:$0]  %s1, 6144, %s33, [#allocation9], 384, 384, 24
    $region9: #{tpu_custom_call.1} parent=1 // pred_fallthru
      _
    // Predicated region
    $region10: #{tpu_custom_call.1} parent=1 // pred_check
      _
    $region11: #{tpu_custom_call.1} parent=1 // pred_check_branch
      %40 = sbr.rel (0) target = $region13
    $region12: #{tpu_custom_call.1} parent=1 // pred_region
      _
    $region13: #{tpu_custom_call.1} parent=1 // pred_fallthru
      _
    // Predicated region
    $region14: #{tpu_custom_call.1} parent=1 // pred_check
      _
    $region15: #{tpu_custom_call.1} parent=1 // pred_check_branch
      %42 = sbr.rel (0) target = $region17
    $region16: #{tpu_custom_call.1} parent=1 // pred_region
      _
    $region17: #{tpu_custom_call.1} parent=1 // pred_fallthru
      _
    // Predicated region
    $region18: #{tpu_custom_call.1} parent=1 // pred_check
      _
    $region19: #{tpu_custom_call.1} parent=1 // pred_check_branch
      %44 = sbr.rel (0) target = $region21
    $region20: #{tpu_custom_call.1} parent=1 // pred_region
      %45 = dma.done [#allocation6], 1024
    $region21: #{tpu_custom_call.1} parent=1 // pred_fallthru
      _
    // Predicated region
    $region22: #{tpu_custom_call.1} parent=1 // pred_check
      _
    $region23: #{tpu_custom_call.1} parent=1 // pred_check_branch
      %47 = sbr.rel (0) target = $region25
    $region24: #{tpu_custom_call.1} parent=1 // pred_region
      %48 = dma.done [#allocation9], 6144
    $region25: #{tpu_custom_call.1} parent=1 // pred_fallthru
      _
    %p49 = scmp.eq.s32.totalorder 0, 0
    // Predicated region
    $region26: #{tpu_custom_call.1} parent=1 // pred_check
      %p50 = pneg %p49
    $region27: #{tpu_custom_call.1} parent=1 // pred_check_branch
      %52 = sbr.rel (%p50) target = $region29
    $region28: #{tpu_custom_call.1} parent=1 // pred_region
      %v53 = vld [vmem:[%s3] sm:$0xff]
      %54 = vst [vmem:[#allocation2] sm:$0xff] %v53
    $region29: #{tpu_custom_call.1} parent=1 // pred_fallthru
      _
    %v55 = vld [vmem:[#allocation5] sm:$0xff]
    %v56 = vld [vmem:[#allocation5 + $0x8] sm:$0xff]
    %v57 = vld [vmem:[#allocation5 + $0x10] sm:$0xff]
    %v58 = vld [vmem:[#allocation5 + $0x18] sm:$0xff]
    %v59 = vld [vmem:[#allocation5 + $0x20] sm:$0xff]
    %v60 = vld [vmem:[#allocation5 + $0x28] sm:$0xff]
    %v61 = vld [vmem:[#allocation5 + $0x30] sm:$0xff]
    %v62 = vld [vmem:[#allocation5 + $0x38] sm:$0xff]
    %v63 = vld [vmem:[#allocation8] sm:$0xff]
    %v64 = vld [vmem:[#allocation8 + $0x8] sm:$0xff]
    %v65 = vld [vmem:[#allocation8 + $0x10] sm:$0xff]
    %v66 = vld [vmem:[#allocation8 + $0x18] sm:$0xff]
    %v67 = vld [vmem:[#allocation8 + $0x20] sm:$0xff]
    %v68 = vld [vmem:[#allocation8 + $0x28] sm:$0xff]
    %v69 = vld [vmem:[#allocation8 + $0x30] sm:$0xff]
    %v70 = vld [vmem:[#allocation8 + $0x38] sm:$0xff]
    %v71 = vld [vmem:[#allocation8 + $0x40] sm:$0xff]
    %v72 = vld [vmem:[#allocation8 + $0x48] sm:$0xff]
    %v73 = vld [vmem:[#allocation8 + $0x50] sm:$0xff]
    %v74 = vld [vmem:[#allocation8 + $0x58] sm:$0xff]
    %v75 = vld [vmem:[#allocation8 + $0x60] sm:$0xff]
    %v76 = vld [vmem:[#allocation8 + $0x68] sm:$0xff]
    %v77 = vld [vmem:[#allocation8 + $0x70] sm:$0xff]
    %v78 = vld [vmem:[#allocation8 + $0x78] sm:$0xff]
    %v79 = vld [vmem:[#allocation8 + $0x80] sm:$0xff]
    %v80 = vld [vmem:[#allocation8 + $0x88] sm:$0xff]
    %v81 = vld [vmem:[#allocation8 + $0x90] sm:$0xff]
    %v82 = vld [vmem:[#allocation8 + $0x98] sm:$0xff]
    %v83 = vld [vmem:[#allocation8 + $0xa0] sm:$0xff]
    %v84 = vld [vmem:[#allocation8 + $0xa8] sm:$0xff]
    %v85 = vld [vmem:[#allocation8 + $0xb0] sm:$0xff]
    %v86 = vld [vmem:[#allocation8 + $0xb8] sm:$0xff]
    %v87 = vld [vmem:[#allocation8 + $0xc0] sm:$0xff]
    %v88 = vld [vmem:[#allocation8 + $0xc8] sm:$0xff]
    %v89 = vld [vmem:[#allocation8 + $0xd0] sm:$0xff]
    %v90 = vld [vmem:[#allocation8 + $0xd8] sm:$0xff]
    %v91 = vld [vmem:[#allocation8 + $0xe0] sm:$0xff]
    %v92 = vld [vmem:[#allocation8 + $0xe8] sm:$0xff]
    %v93 = vld [vmem:[#allocation8 + $0xf0] sm:$0xff]
    %v94 = vld [vmem:[#allocation8 + $0xf8] sm:$0xff]
    %v95 = vld [vmem:[#allocation8 + $0x100] sm:$0xff]
    %v96 = vld [vmem:[#allocation8 + $0x108] sm:$0xff]
    %v97 = vld [vmem:[#allocation8 + $0x110] sm:$0xff]
    %v98 = vld [vmem:[#allocation8 + $0x118] sm:$0xff]
    %v99 = vld [vmem:[#allocation8 + $0x120] sm:$0xff]
    %v100 = vld [vmem:[#allocation8 + $0x128] sm:$0xff]
    %v101 = vld [vmem:[#allocation8 + $0x130] sm:$0xff]
    %v102 = vld [vmem:[#allocation8 + $0x138] sm:$0xff]
    %v103 = vld [vmem:[#allocation8 + $0x140] sm:$0xff]
    %v104 = vld [vmem:[#allocation8 + $0x148] sm:$0xff]
    %v105 = vld [vmem:[#allocation8 + $0x150] sm:$0xff]
    %v106 = vld [vmem:[#allocation8 + $0x158] sm:$0xff]
    %v107 = vld [vmem:[#allocation8 + $0x160] sm:$0xff]
    %v108 = vld [vmem:[#allocation8 + $0x168] sm:$0xff]
    %v109 = vld [vmem:[#allocation8 + $0x170] sm:$0xff]
    %v110 = vld [vmem:[#allocation8 + $0x178] sm:$0xff]
    %111 = vmatprep.subr.mxu0 %v64
    %112 = vmatpush1.msra.mxu0 %v63
    %113 = vmatprep.subr.mxu0 %v67
    %114 = vmatpush1.msra.mxu0 %v66
    %115 = vmatprep.subr.mxu0 %v70
    %116 = vmatpush1.msra.mxu0 %v69
    %117 = vmatprep.subr.mxu0 %v73
    %118 = vmatpush1.msra.mxu0 %v72
    %119 = vmatprep.subr.mxu0 %v76
    %120 = vmatpush1.msra.mxu0 %v75
    %121 = vmatprep.subr.mxu0 %v79
    %122 = vmatpush1.msra.mxu0 %v78
    %123 = vmatprep.subr.mxu0 %v82
    %124 = vmatpush1.msra.mxu0 %v81
    %125 = vmatprep.subr.mxu0 %v85
    %126 = vmatpush1.msra.mxu0 %v84
    %127 = vmatprep.subr.mxu0 %v88
    %128 = vmatpush1.msra.mxu0 %v87
    %129 = vmatprep.subr.mxu0 %v91
    %130 = vmatpush1.msra.mxu0 %v90
    %131 = vmatprep.subr.mxu0 %v94
    %132 = vmatpush1.msra.mxu0 %v93
    %133 = vmatprep.subr.mxu0 %v97
    %134 = vmatpush1.msra.mxu0 %v96
    %135 = vmatprep.subr.mxu0 %v100
    %136 = vmatpush1.msra.mxu0 %v99
    %137 = vmatprep.subr.mxu0 %v103
    %138 = vmatpush1.msra.mxu0 %v102
    %139 = vmatprep.subr.mxu0 %v106
    %140 = vmatpush1.msra.mxu0 %v105
    %141 = vmatprep.subr.mxu0 %v109
    %142 = vmatpush1.msra.mxu0 %v108
    %143 = vmatprep.subr.mxu0 0.0
    %144 = vmatpush1.msra.mxu0 0.0
    %145 = vmatprep.subr.mxu0 0.0
    %146 = vmatpush1.msra.mxu0 0.0
    %147 = vmatprep.subr.mxu0 0.0
    %148 = vmatpush1.msra.mxu0 0.0
    %149 = vmatprep.subr.mxu0 0.0
    %150 = vmatpush1.msra.mxu0 0.0
    %151 = vmatprep.subr.mxu0 0.0
    %152 = vmatpush1.msra.mxu0 0.0
    %153 = vmatprep.subr.mxu0 0.0
    %154 = vmatpush1.msra.mxu0 0.0
    %155 = vmatprep.subr.mxu0 0.0
    %156 = vmatpush1.msra.mxu0 0.0
    %157 = vmatprep.subr.mxu0 0.0
    %158 = vmatpush1.msra.mxu0 0.0
    %159 = vmatprep.subr.mxu0 0.0
    %160 = vmatpush1.msra.mxu0 0.0
    %161 = vmatprep.subr.mxu0 0.0
    %162 = vmatpush1.msra.mxu0 0.0
    %163 = vmatprep.subr.mxu0 0.0
    %164 = vmatpush1.msra.mxu0 0.0
    %165 = vmatprep.subr.mxu0 0.0
    %166 = vmatpush1.msra.mxu0 0.0
    %167 = vmatprep.subr.mxu0 0.0
    %168 = vmatpush1.msra.mxu0 0.0
    %169 = vmatprep.subr.mxu0 0.0
    %170 = vmatpush1.msra.mxu0 0.0
    %171 = vmatprep.subr.mxu0 0.0
    %172 = vmatpush1.msra.mxu0 0.0
    %173 = vmatprep.subr.mxu0 0.0
    %174 = vmatpush1.msra.mxu0 0.0
    %175 = vmatprep.mubr.f32.mxu0 0.0
    %176 = vmatmul.mubr.f32.gmra.mrb[0].mxu0 %v55
    %v177 = vpop.f32.mrb[0].mxu0
    %v178 = vadd.f32 0.0, %v177
    %v179 = vpop.f32.mrb[0].mxu0
    %v180 = vadd.f32 0.0, %v179
    %181 = vmatprep.mubr.f32.mxu0 0.0
    %182 = vmatmul.mubr.f32.gmra.mrb[0].mxu0 %v56
    %v183 = vpop.f32.mrb[0].mxu0
    %v184 = vadd.f32 0.0, %v183
    %v185 = vpop.f32.mrb[0].mxu0
    %v186 = vadd.f32 0.0, %v185
    %187 = vmatprep.mubr.f32.mxu0 0.0
    %188 = vmatmul.mubr.f32.gmra.mrb[0].mxu0 %v57
    %v189 = vpop.f32.mrb[0].mxu0
    %v190 = vadd.f32 0.0, %v189
    %v191 = vpop.f32.mrb[0].mxu0
    %v192 = vadd.f32 0.0, %v191
    %193 = vmatprep.mubr.f32.mxu0 0.0
    %194 = vmatmul.mubr.f32.gmra.mrb[0].mxu0 %v58
    %v195 = vpop.f32.mrb[0].mxu0
    %v196 = vadd.f32 0.0, %v195
    %v197 = vpop.f32.mrb[0].mxu0
    %v198 = vadd.f32 0.0, %v197
    %199 = vmatprep.mubr.f32.mxu0 0.0
    %200 = vmatmul.mubr.f32.gmra.mrb[0].mxu0 %v59
    %v201 = vpop.f32.mrb[0].mxu0
    %v202 = vadd.f32 0.0, %v201
    %v203 = vpop.f32.mrb[0].mxu0
    %v204 = vadd.f32 0.0, %v203
    %205 = vmatprep.mubr.f32.mxu0 0.0
    %206 = vmatmul.mubr.f32.gmra.mrb[0].mxu0 %v60
    %v207 = vpop.f32.mrb[0].mxu0
    %v208 = vadd.f32 0.0, %v207
    %v209 = vpop.f32.mrb[0].mxu0
    %v210 = vadd.f32 0.0, %v209
    %211 = vmatprep.mubr.f32.mxu0 0.0
    %212 = vmatmul.mubr.f32.gmra.mrb[0].mxu0 %v61
    %v213 = vpop.f32.mrb[0].mxu0
    %v214 = vadd.f32 0.0, %v213
    %v215 = vpop.f32.mrb[0].mxu0
    %v216 = vadd.f32 0.0, %v215
    %217 = vmatprep.mubr.f32.mxu0 0.0
    %218 = vmatmul.mubr.f32.gmra.mrb[0].mxu0 %v62
    %v219 = vpop.f32.mrb[0].mxu0
    %v220 = vadd.f32 0.0, %v219
    %v221 = vpop.f32.mrb[0].mxu0
    %v222 = vadd.f32 0.0, %v221
    %223 = vdwg.mxu0
    %v224 = vld [vmem:[%s2] sm:$0x1]
    %v225 = vlaneseq
    %v226 = vshrl.u32 %v225, 7
    %v227 = vsub.s32 0, %v226
    %v228 = vrot.slane %v224, %v227
    %v229 = vadd.f32 %v180, %v228
    %v230 = vadd.f32 %v186, %v228
    %v231 = vadd.f32 %v192, %v228
    %v232 = vadd.f32 %v198, %v228
    %v233 = vadd.f32 %v204, %v228
    %v234 = vadd.f32 %v210, %v228
    %v235 = vadd.f32 %v216, %v228
    %v236 = vadd.f32 %v222, %v228
    %v237 = vxor.u32 %v229, 2147483648
    %v238 = vxor.u32 %v230, 2147483648
    %v239 = vxor.u32 %v231, 2147483648
    %v240 = vxor.u32 %v232, 2147483648
    %v241 = vxor.u32 %v233, 2147483648
    %v242 = vxor.u32 %v234, 2147483648
    %v243 = vxor.u32 %v235, 2147483648
    %v244 = vxor.u32 %v236, 2147483648
    %v245 = vmul.f32 %v237, 1.442695
    %v246 = vpow.pop %v245
    %v247 = vmul.f32 %v238, 1.442695
    %v248 = vpow.pop %v247
    %v249 = vmul.f32 %v239, 1.442695
    %v250 = vpow.pop %v249
    %v251 = vmul.f32 %v240, 1.442695
    %v252 = vpow.pop %v251
    %v253 = vmul.f32 %v241, 1.442695
    %v254 = vpow.pop %v253
    %v255 = vmul.f32 %v242, 1.442695
    %v256 = vpow.pop %v255
    %v257 = vmul.f32 %v243, 1.442695
    %v258 = vpow.pop %v257
    %v259 = vmul.f32 %v244, 1.442695
    %v260 = vpow.pop %v259
    %v261 = vadd.f32 %v246, 1.0
    %v262 = vadd.f32 %v248, 1.0
    %v263 = vadd.f32 %v250, 1.0
    %v264 = vadd.f32 %v252, 1.0
    %v265 = vadd.f32 %v254, 1.0
    %v266 = vadd.f32 %v256, 1.0
    %v267 = vadd.f32 %v258, 1.0
    %v268 = vadd.f32 %v260, 1.0
    %v269 = vrcp.pop %v261
    %v270 = vmul.f32 1.0, %v269
    %v271 = vrcp.pop %v262
    %v272 = vmul.f32 1.0, %v271
    %v273 = vrcp.pop %v263
    %v274 = vmul.f32 1.0, %v273
    %v275 = vrcp.pop %v264
    %v276 = vmul.f32 1.0, %v275
    %v277 = vrcp.pop %v265
    %v278 = vmul.f32 1.0, %v277
    %v279 = vrcp.pop %v266
    %v280 = vmul.f32 1.0, %v279
    %v281 = vrcp.pop %v267
    %v282 = vmul.f32 1.0, %v281
    %v283 = vrcp.pop %v268
    %v284 = vmul.f32 1.0, %v283
    %v285 = vsub.f32 1.0, %v270
    %v286 = vsub.f32 1.0, %v272
    %v287 = vsub.f32 1.0, %v274
    %v288 = vsub.f32 1.0, %v276
    %v289 = vsub.f32 1.0, %v278
    %v290 = vsub.f32 1.0, %v280
    %v291 = vsub.f32 1.0, %v282
    %v292 = vsub.f32 1.0, %v284
    %v293 = vmul.f32 %v285, %v178
    %v294 = vmul.f32 %v286, %v184
    %v295 = vmul.f32 %v287, %v190
    %v296 = vmul.f32 %v288, %v196
    %v297 = vmul.f32 %v289, %v202
    %v298 = vmul.f32 %v290, %v208
    %v299 = vmul.f32 %v291, %v214
    %v300 = vmul.f32 %v292, %v220
    %301 = vst [vmem:[#allocation3] sm:$0xff] %v293
    %302 = vst [vmem:[#allocation3 + $0x8] sm:$0xff] %v294
    %303 = vst [vmem:[#allocation3 + $0x10] sm:$0xff] %v295
    %304 = vst [vmem:[#allocation3 + $0x18] sm:$0xff] %v296
    %305 = vst [vmem:[#allocation3 + $0x20] sm:$0xff] %v297
    %306 = vst [vmem:[#allocation3 + $0x28] sm:$0xff] %v298
    %307 = vst [vmem:[#allocation3 + $0x30] sm:$0xff] %v299
    %308 = vst [vmem:[#allocation3 + $0x38] sm:$0xff] %v300
    %309 = vst [vmem:[#allocation4] sm:$0xff] %v270
    %310 = vst [vmem:[#allocation4 + $0x8] sm:$0xff] %v272
    %311 = vst [vmem:[#allocation4 + $0x10] sm:$0xff] %v274
    %312 = vst [vmem:[#allocation4 + $0x18] sm:$0xff] %v276
    %313 = vst [vmem:[#allocation4 + $0x20] sm:$0xff] %v278
    %314 = vst [vmem:[#allocation4 + $0x28] sm:$0xff] %v280
    %315 = vst [vmem:[#allocation4 + $0x30] sm:$0xff] %v282
    %316 = vst [vmem:[#allocation4 + $0x38] sm:$0xff] %v284
    %v317 = vld [vmem:[#allocation2] sm:$0xff]
    %v318 = vld [vmem:[#allocation4] sm:$0xff]
    %v319 = vmul.f32 %v318, %v317
    %v320 = vld [vmem:[#allocation3] sm:$0xff]
    %v321 = vadd.f32 %v319, %v320
    %322 = vst [vmem:[#allocation3] sm:$0xff] %v321
    %s323 = scalar_lea.vmem [#allocation4], 8
    %v324 = vld [vmem:[%s323] sm:$0xff]
    %v325 = vmul.f32 %v324, %v321
    %s326 = scalar_lea.vmem [#allocation3], 8
    %v327 = vld [vmem:[%s326] sm:$0xff]
    %v328 = vadd.f32 %v325, %v327
    %329 = vst [vmem:[%s326] sm:$0xff] %v328
    %s330 = scalar_lea.vmem [#allocation4], 16
    %v331 = vld [vmem:[%s330] sm:$0xff]
    %v332 = vmul.f32 %v331, %v328
    %s333 = scalar_lea.vmem [#allocation3], 16
    %v334 = vld [vmem:[%s333] sm:$0xff]
    %v335 = vadd.f32 %v332, %v334
    %336 = vst [vmem:[%s333] sm:$0xff] %v335
    %s337 = scalar_lea.vmem [#allocation4], 24
    %v338 = vld [vmem:[%s337] sm:$0xff]
    %v339 = vmul.f32 %v338, %v335
    %s340 = scalar_lea.vmem [#allocation3], 24
    %v341 = vld [vmem:[%s340] sm:$0xff]
    %v342 = vadd.f32 %v339, %v341
    %343 = vst [vmem:[%s340] sm:$0xff] %v342
    %s344 = scalar_lea.vmem [#allocation4], 32
    %v345 = vld [vmem:[%s344] sm:$0xff]
    %v346 = vmul.f32 %v345, %v342
    %s347 = scalar_lea.vmem [#allocation3], 32
    %v348 = vld [vmem:[%s347] sm:$0xff]
    %v349 = vadd.f32 %v346, %v348
    %350 = vst [vmem:[%s347] sm:$0xff] %v349
    %s351 = scalar_lea.vmem [#allocation4], 40
    %v352 = vld [vmem:[%s351] sm:$0xff]
    %v353 = vmul.f32 %v352, %v349
    %s354 = scalar_lea.vmem [#allocation3], 40
    %v355 = vld [vmem:[%s354] sm:$0xff]
    %v356 = vadd.f32 %v353, %v355
    %357 = vst [vmem:[%s354] sm:$0xff] %v356
    %s358 = scalar_lea.vmem [#allocation4], 48
    %v359 = vld [vmem:[%s358] sm:$0xff]
    %v360 = vmul.f32 %v359, %v356
    %s361 = scalar_lea.vmem [#allocation3], 48
    %v362 = vld [vmem:[%s361] sm:$0xff]
    %v363 = vadd.f32 %v360, %v362
    %364 = vst [vmem:[%s361] sm:$0xff] %v363
    %s365 = scalar_lea.vmem [#allocation4], 56
    %v366 = vld [vmem:[%s365] sm:$0xff]
    %v367 = vmul.f32 %v366, %v363
    %s368 = scalar_lea.vmem [#allocation3], 56
    %v369 = vld [vmem:[%s368] sm:$0xff]
    %v370 = vadd.f32 %v367, %v369
    %371 = vst [vmem:[%s368] sm:$0xff] %v370
    %372 = vst [vmem:[#allocation2] sm:$0xff] %v370
    %v373 = vld [vmem:[%s2 + $0x1] sm:$0x1]
    %v374 = vlaneseq
    %v375 = vshrl.u32 %v374, 7
    %v376 = vsub.s32 0, %v375
    %v377 = vrot.slane %v373, %v376
    %378 = vmatprep.subr.mxu0 0.0
    %379 = vmatpush1.msra.mxu0 %v65
    %380 = vmatprep.subr.mxu0 0.0
    %381 = vmatpush1.msra.mxu0 %v68
    %382 = vmatprep.subr.mxu0 0.0
    %383 = vmatpush1.msra.mxu0 %v71
    %384 = vmatprep.subr.mxu0 0.0
    %385 = vmatpush1.msra.mxu0 %v74
    %386 = vmatprep.subr.mxu0 0.0
    %387 = vmatpush1.msra.mxu0 %v77
    %388 = vmatprep.subr.mxu0 0.0
    %389 = vmatpush1.msra.mxu0 %v80
    %390 = vmatprep.subr.mxu0 0.0
    %391 = vmatpush1.msra.mxu0 %v83
    %392 = vmatprep.subr.mxu0 0.0
    %393 = vmatpush1.msra.mxu0 %v86
    %394 = vmatprep.subr.mxu0 0.0
    %395 = vmatpush1.msra.mxu0 %v89
    %396 = vmatprep.subr.mxu0 0.0
    %397 = vmatpush1.msra.mxu0 %v92
    %398 = vmatprep.subr.mxu0 0.0
    %399 = vmatpush1.msra.mxu0 %v95
    %400 = vmatprep.subr.mxu0 0.0
    %401 = vmatpush1.msra.mxu0 %v98
    %402 = vmatprep.subr.mxu0 0.0
    %403 = vmatpush1.msra.mxu0 %v101
    %404 = vmatprep.subr.mxu0 0.0
    %405 = vmatpush1.msra.mxu0 %v104
    %406 = vmatprep.subr.mxu0 0.0
    %407 = vmatpush1.msra.mxu0 %v107
    %408 = vmatprep.subr.mxu0 0.0
    %409 = vmatpush1.msra.mxu0 %v110
    %410 = vmatprep.subr.mxu0 0.0
    %411 = vmatpush1.msra.mxu0 0.0
    %412 = vmatprep.subr.mxu0 0.0
    %413 = vmatpush1.msra.mxu0 0.0
    %414 = vmatprep.subr.mxu0 0.0
    %415 = vmatpush1.msra.mxu0 0.0
    %416 = vmatprep.subr.mxu0 0.0
    %417 = vmatpush1.msra.mxu0 0.0
    %418 = vmatprep.subr.mxu0 0.0
    %419 = vmatpush1.msra.mxu0 0.0
    %420 = vmatprep.subr.mxu0 0.0
    %421 = vmatpush1.msra.mxu0 0.0
    %422 = vmatprep.subr.mxu0 0.0
    %423 = vmatpush1.msra.mxu0 0.0
    %424 = vmatprep.subr.mxu0 0.0
    %425 = vmatpush1.msra.mxu0 0.0
    %426 = vmatprep.subr.mxu0 0.0
    %427 = vmatpush1.msra.mxu0 0.0
    %428 = vmatprep.subr.mxu0 0.0
    %429 = vmatpush1.msra.mxu0 0.0
    %430 = vmatprep.subr.mxu0 0.0
    %431 = vmatpush1.msra.mxu0 0.0
    %432 = vmatprep.subr.mxu0 0.0
    %433 = vmatpush1.msra.mxu0 0.0
    %434 = vmatprep.subr.mxu0 0.0
    %435 = vmatpush1.msra.mxu0 0.0
    %436 = vmatprep.subr.mxu0 0.0
    %437 = vmatpush1.msra.mxu0 0.0
    %438 = vmatprep.subr.mxu0 0.0
    %439 = vmatpush1.msra.mxu0 0.0
    %440 = vmatprep.subr.mxu0 0.0
    %441 = vmatpush1.msra.mxu0 0.0
    %442 = vmatprep.mubr.f32.mxu0 0.0
    %443 = vmatmul.mubr.f32.gmra.mrb[0].mxu0 %v55
    %v444 = vpop.f32.mrb[0].mxu0
    %v445 = vadd.f32 %v377, %v444
    %v446 = vpop.f32.mrb[0].mxu0
    %447 = vmatprep.mubr.f32.mxu0 0.0
    %448 = vmatmul.mubr.f32.gmra.mrb[0].mxu0 %v56
    %v449 = vpop.f32.mrb[0].mxu0
    %v450 = vadd.f32 %v377, %v449
    %v451 = vpop.f32.mrb[0].mxu0
    %452 = vmatprep.mubr.f32.mxu0 0.0
    %453 = vmatmul.mubr.f32.gmra.mrb[0].mxu0 %v57
    %v454 = vpop.f32.mrb[0].mxu0
    %v455 = vadd.f32 %v377, %v454
    %v456 = vpop.f32.mrb[0].mxu0
    %457 = vmatprep.mubr.f32.mxu0 0.0
    %458 = vmatmul.mubr.f32.gmra.mrb[0].mxu0 %v58
    %v459 = vpop.f32.mrb[0].mxu0
    %v460 = vadd.f32 %v377, %v459
    %v461 = vpop.f32.mrb[0].mxu0
    %462 = vmatprep.mubr.f32.mxu0 0.0
    %463 = vmatmul.mubr.f32.gmra.mrb[0].mxu0 %v59
    %v464 = vpop.f32.mrb[0].mxu0
    %v465 = vadd.f32 %v377, %v464
    %v466 = vpop.f32.mrb[0].mxu0
    %467 = vmatprep.mubr.f32.mxu0 0.0
    %468 = vmatmul.mubr.f32.gmra.mrb[0].mxu0 %v60
    %v469 = vpop.f32.mrb[0].mxu0
    %v470 = vadd.f32 %v377, %v469
    %v471 = vpop.f32.mrb[0].mxu0
    %472 = vmatprep.mubr.f32.mxu0 0.0
    %473 = vmatmul.mubr.f32.gmra.mrb[0].mxu0 %v61
    %v474 = vpop.f32.mrb[0].mxu0
    %v475 = vadd.f32 %v377, %v474
    %v476 = vpop.f32.mrb[0].mxu0
    %477 = vmatprep.mubr.f32.mxu0 0.0
    %478 = vmatmul.mubr.f32.gmra.mrb[0].mxu0 %v62
    %v479 = vpop.f32.mrb[0].mxu0
    %v480 = vadd.f32 %v377, %v479
    %v481 = vpop.f32.mrb[0].mxu0
    %482 = vdwg.mxu0
    %v483 = vxor.u32 %v445, 2147483648
    %v484 = vxor.u32 %v450, 2147483648
    %v485 = vxor.u32 %v455, 2147483648
    %v486 = vxor.u32 %v460, 2147483648
    %v487 = vxor.u32 %v465, 2147483648
    %v488 = vxor.u32 %v470, 2147483648
    %v489 = vxor.u32 %v475, 2147483648
    %v490 = vxor.u32 %v480, 2147483648
    %v491 = vmul.f32 %v483, 1.442695
    %v492 = vpow.pop %v491
    %v493 = vmul.f32 %v484, 1.442695
    %v494 = vpow.pop %v493
    %v495 = vmul.f32 %v485, 1.442695
    %v496 = vpow.pop %v495
    %v497 = vmul.f32 %v486, 1.442695
    %v498 = vpow.pop %v497
    %v499 = vmul.f32 %v487, 1.442695
    %v500 = vpow.pop %v499
    %v501 = vmul.f32 %v488, 1.442695
    %v502 = vpow.pop %v501
    %v503 = vmul.f32 %v489, 1.442695
    %v504 = vpow.pop %v503
    %v505 = vmul.f32 %v490, 1.442695
    %v506 = vpow.pop %v505
    %v507 = vadd.f32 %v492, 1.0
    %v508 = vadd.f32 %v494, 1.0
    %v509 = vadd.f32 %v496, 1.0
    %v510 = vadd.f32 %v498, 1.0
    %v511 = vadd.f32 %v500, 1.0
    %v512 = vadd.f32 %v502, 1.0
    %v513 = vadd.f32 %v504, 1.0
    %v514 = vadd.f32 %v506, 1.0
    %v515 = vrcp.pop %v507
    %v516 = vmul.f32 1.0, %v515
    %v517 = vrcp.pop %v508
    %v518 = vmul.f32 1.0, %v517
    %v519 = vrcp.pop %v509
    %v520 = vmul.f32 1.0, %v519
    %v521 = vrcp.pop %v510
    %v522 = vmul.f32 1.0, %v521
    %v523 = vrcp.pop %v511
    %v524 = vmul.f32 1.0, %v523
    %v525 = vrcp.pop %v512
    %v526 = vmul.f32 1.0, %v525
    %v527 = vrcp.pop %v513
    %v528 = vmul.f32 1.0, %v527
    %v529 = vrcp.pop %v514
    %v530 = vmul.f32 1.0, %v529
    %v531 = vmul.f32 %v55, 1.7320508
    %v532 = vmul.f32 %v56, 1.7320508
    %v533 = vmul.f32 %v57, 1.7320508
    %v534 = vmul.f32 %v58, 1.7320508
    %v535 = vmul.f32 %v59, 1.7320508
    %v536 = vmul.f32 %v60, 1.7320508
    %v537 = vmul.f32 %v61, 1.7320508
    %v538 = vmul.f32 %v62, 1.7320508
    %v539 = vld [vmem:[#allocation3] sm:$0xff]
    %v540 = vld [vmem:[#allocation3 + $0x8] sm:$0xff]
    %v541 = vld [vmem:[#allocation3 + $0x10] sm:$0xff]
    %v542 = vld [vmem:[#allocation3 + $0x18] sm:$0xff]
    %v543 = vld [vmem:[#allocation3 + $0x20] sm:$0xff]
    %v544 = vld [vmem:[#allocation3 + $0x28] sm:$0xff]
    %v545 = vld [vmem:[#allocation3 + $0x30] sm:$0xff]
    %v546 = vld [vmem:[#allocation3 + $0x38] sm:$0xff]
    %v547 = vtanh.pop %v539
    %v548 = vtanh.pop %v540
    %v549 = vtanh.pop %v541
    %v550 = vtanh.pop %v542
    %v551 = vtanh.pop %v543
    %v552 = vtanh.pop %v544
    %v553 = vtanh.pop %v545
    %v554 = vtanh.pop %v546
    %v555 = vsub.f32 %v547, %v531
    %v556 = vsub.f32 %v548, %v532
    %v557 = vsub.f32 %v549, %v533
    %v558 = vsub.f32 %v550, %v534
    %v559 = vsub.f32 %v551, %v535
    %v560 = vsub.f32 %v552, %v536
    %v561 = vsub.f32 %v553, %v537
    %v562 = vsub.f32 %v554, %v538
    %v563 = vmul.f32 %v555, %v516
    %v564 = vmul.f32 %v556, %v518
    %v565 = vmul.f32 %v557, %v520
    %v566 = vmul.f32 %v558, %v522
    %v567 = vmul.f32 %v559, %v524
    %v568 = vmul.f32 %v560, %v526
    %v569 = vmul.f32 %v561, %v528
    %v570 = vmul.f32 %v562, %v530
    %v571 = vadd.f32 %v563, %v531
    %v572 = vadd.f32 %v564, %v532
    %v573 = vadd.f32 %v565, %v533
    %v574 = vadd.f32 %v566, %v534
    %v575 = vadd.f32 %v567, %v535
    %v576 = vadd.f32 %v568, %v536
    %v577 = vadd.f32 %v569, %v537
    %v578 = vadd.f32 %v570, %v538
    %579 = vst [vmem:[#allocation10] sm:$0xff] %v571
    %580 = vst [vmem:[#allocation10 + $0x8] sm:$0xff] %v572
    %581 = vst [vmem:[#allocation10 + $0x10] sm:$0xff] %v573
    %582 = vst [vmem:[#allocation10 + $0x18] sm:$0xff] %v574
    %583 = vst [vmem:[#allocation10 + $0x20] sm:$0xff] %v575
    %584 = vst [vmem:[#allocation10 + $0x28] sm:$0xff] %v576
    %585 = vst [vmem:[#allocation10 + $0x30] sm:$0xff] %v577
    %586 = vst [vmem:[#allocation10 + $0x38] sm:$0xff] %v578
    // Predicated region
    $region30: #{tpu_custom_call.1} parent=1 // pred_check
      %p587 = pneg %p49
    $region31: #{tpu_custom_call.1} parent=1 // pred_check_branch
      %589 = sbr.rel (%p587) target = $region33
    $region32: #{tpu_custom_call.1} parent=1 // pred_region
      %590 = vst [vmem:[#allocation11] sm:$0xff] %v370
    $region33: #{tpu_custom_call.1} parent=1 // pred_fallthru
      _
    // Predicated region
    $region34: #{tpu_custom_call.1} parent=1 // pred_check
      _
    $region35: #{tpu_custom_call.1} parent=1 // pred_check_branch
      %592 = sbr.rel (0) target = $region37
    $region36: #{tpu_custom_call.1} parent=1 // pred_region
      %s594 = ssub.s32 1024, 1024
      %595 = vsyncadd [#allocation7], %s594
      %s596 = sshll.u32 [#allocation10], 4
      %s597 = int_to_ptr.vmem [resolvable:$true] %s596
      %602 = dma.vmem_to_hbm [thread:$0]  %s597, 1024, %s4, [#allocation7], 128, 128, 8
    $region37: #{tpu_custom_call.1} parent=1 // pred_fallthru
      _
    // Predicated region
    $region38: #{tpu_custom_call.1} parent=1 // pred_check
      _
    $region39: #{tpu_custom_call.1} parent=1 // pred_check_branch
      %604 = sbr.rel (0) target = $region41
    $region40: #{tpu_custom_call.1} parent=1 // pred_region
      %s606 = ssub.s32 128, 128
      %607 = vsyncadd [#allocation12], %s606
      %s609 = sshll.u32 [#allocation11], 4
      %s610 = int_to_ptr.vmem [resolvable:$true] %s609
      %612 = dma.vmem_to_hbm [thread:$0]  %s610, 128, %s5, [#allocation12]
    $region41: #{tpu_custom_call.1} parent=1 // pred_fallthru
      _
    // Predicated region
    $region42: #{tpu_custom_call.1} parent=1 // pred_check
      _
    $region43: #{tpu_custom_call.1} parent=1 // pred_check_branch
      %614 = sbr.rel (0) target = $region45
    $region44: #{tpu_custom_call.1} parent=1 // pred_region
      %615 = dma.done [#allocation7], 1024
    $region45: #{tpu_custom_call.1} parent=1 // pred_fallthru
      _
    // Predicated region
    $region46: #{tpu_custom_call.1} parent=1 // pred_check
      _
    $region47: #{tpu_custom_call.1} parent=1 // pred_check_branch
      %617 = sbr.rel (0) target = $region49
    $region48: #{tpu_custom_call.1} parent=1 // pred_region
      %618 = dma.done [#allocation12], 128
    $region49: #{tpu_custom_call.1} parent=1 // pred_fallthru
      _
    %619 = vsyncpa [#allocation6], 1
    %620 = vsyncpa [#allocation9], 1
    %621 = vsyncpa [#allocation7], 1
    %622 = vsyncpa [#allocation12], 1

</llo_original>
